<compile_context>
chip_gen: v7x
topology: tpu7x:2x2x1
jax: 0.10.0
libtpu: 0.0.40
codegen_flags: <defaults>
</compile_context>

<pallas_src>
from typing import Dict, List

import jax
import jax.numpy as jnp
from jax.experimental import pallas as pl
from jax.experimental.pallas import tpu as pltpu


def _make_hbm_copy_kernel(n: int):
    """Kernel body: n raw HBM input refs -> n raw HBM output refs via async DMA."""

    def kernel(*refs):
        in_refs = refs[:n]
        out_refs = refs[n:2 * n]
        sem = refs[2 * n]
        copies = [
            pltpu.make_async_copy(in_refs[i], out_refs[i], sem.at[i])
            for i in range(n)
        ]
        # Issue every DMA first so they are all in flight, then wait on all of
        # them — maximizes HBM-engine overlap for many small features.
        for cp in copies:
            cp.start()
        for cp in copies:
            cp.wait()

    return kernel


def _materialize(features: Dict[str, jnp.ndarray]) -> Dict[str, jnp.ndarray]:
    """Copy every selected feature through one fused HBM->HBM DMA pallas_call."""
    names = list(features.keys())
    arrays = [features[nm] for nm in names]

    # 0-d features: give the DMA a 1-element rank-1 view (free metadata reshape).
    views = [a.reshape(1) if a.ndim == 0 else a for a in arrays]

    # Zero-size features need no copy at all.
    copy_idx = [i for i, v in enumerate(views) if v.size > 0]
    if not copy_idx:
        return dict(zip(names, arrays))

    to_copy = [views[i] for i in copy_idx]
    n = len(to_copy)
    total_bytes = sum(int(v.size) * jnp.dtype(v.dtype).itemsize for v in to_copy)

    hbm_spec = pl.BlockSpec(memory_space=pl.ANY)
    outs = pl.pallas_call(
        _make_hbm_copy_kernel(n),
        out_shape=tuple(jax.ShapeDtypeStruct(v.shape, v.dtype) for v in to_copy),
        in_specs=[hbm_spec] * n,
        out_specs=tuple(hbm_spec for _ in range(n)),
        scratch_shapes=[pltpu.SemaphoreType.DMA((n,))],
        cost_estimate=pl.CostEstimate(
            flops=0, transcendentals=0, bytes_accessed=2 * total_bytes),
    )(*to_copy)
    if n == 1:
        outs = (outs,) if not isinstance(outs, (tuple, list)) else tuple(outs)

    results = list(arrays)
    for i, o in zip(copy_idx, outs):
        results[i] = o.reshape(arrays[i].shape)
    return dict(zip(names, results))


class FilterFeatures:
    """JAX/Pallas port of transformers4rec FilterFeatures.

    to_include : feature names to keep in the output dict.
    pop        : if True, the kept keys are removed from the input dict.
    materialize: if True, selected features are copied through a single fused
                 HBM->HBM DMA Pallas kernel; default False = zero data movement
                 (the recommended path, matching the PyTorch module exactly).
    """

    def __init__(self, to_include: List[str], pop: bool = False,
                 materialize: bool = False):
        self.to_include = to_include
        self.pop = pop
        self.materialize = materialize

    def forward(self, inputs: Dict[str, jnp.ndarray], **kwargs) -> Dict[str, jnp.ndarray]:
        assert isinstance(inputs, dict), "Inputs needs to be a dict"
        # Dict filtering is pure metadata — no kernel, no copy.
        outputs = {k: v for k, v in inputs.items() if k in self.to_include}
        if self.materialize and outputs:
            outputs = _materialize(outputs)
        if self.pop:
            for key in list(outputs.keys()):
                inputs.pop(key)
        return outputs

    __call__ = forward

    def forward_output_size(self, input_shape):
        return {k: v for k, v in input_shape.items() if k in self.to_include}


if __name__ == "__main__":
    key = jax.random.PRNGKey(0)
    batch, seq, hidden = 2, 8, 32

    k1, k2, k3, k4, k5 = jax.random.split(key, 5)
    inputs = {
        "item_id_emb": jax.random.normal(k1, (batch, seq, hidden), jnp.float32),
        "category_emb": jax.random.normal(k2, (batch, seq, hidden), jnp.float32),
        "price": jax.random.normal(k3, (batch, seq, hidden), jnp.float32),
        "age": jax.random.normal(k4, (batch, hidden), jnp.float32),
        # non-128-multiple size + different dtype: exercises heterogeneous fusion
        "item_ids": jax.random.randint(k5, (batch, seq), 0, 1000, jnp.int32),
    }
    originals = dict(inputs)  # keep references for verification (pop mutates)

    # Materializing path: one fused HBM->HBM DMA pallas_call copies all three
    # selected features (mixed shapes / dtypes) in a single kernel invocation.
    module = FilterFeatures(to_include=["item_id_emb", "price", "item_ids"],
                            pop=True, materialize=True)
    outputs = module(inputs)
    for v in outputs.values():
        jax.block_until_ready(v)

    assert set(outputs.keys()) == {"item_id_emb", "price", "item_ids"}
    assert "item_id_emb" not in inputs and "price" not in inputs   # pop=True
    assert "item_ids" not in inputs
    assert "category_emb" in inputs and "age" in inputs
    for name in ("item_id_emb", "price", "item_ids"):
        assert outputs[name].shape == originals[name].shape
        assert outputs[name].dtype == originals[name].dtype
        assert bool(jnp.array_equal(outputs[name], originals[name]))

    # Default path (recommended): pure dict filtering, zero data movement.
    passthrough = FilterFeatures(to_include=["category_emb", "age"])(inputs)
    assert set(passthrough.keys()) == {"category_emb", "age"}
    assert passthrough["category_emb"] is originals["category_emb"]  # no copy issued
    assert passthrough["age"] is originals["age"]

    print("KERNEL_OK")
</pallas_src>

<mosaic_0001>
module attributes {stable_mosaic.version = 11 : i64} {
  func.func @kernel(%arg0: memref<2x8x32xf32, #tpu.memory_space<any>>, %arg1: memref<2x8x32xf32, #tpu.memory_space<any>>, %arg2: memref<2x8xi32, #tpu.memory_space<any>>, %arg3: memref<2x8x32xf32, #tpu.memory_space<any>>, %arg4: memref<2x8x32xf32, #tpu.memory_space<any>>, %arg5: memref<2x8xi32, #tpu.memory_space<any>>, %arg6: memref<3x!tpu.dma_semaphore, #tpu.memory_space<semaphore_mem>>) attributes {dimension_semantics = [], scalar_prefetch = 0 : i64, scratch_operands = 1 : i64, tpu.core_type = #tpu.core_type<tc>} {
    %c0_i32 = arith.constant 0 : i32
    %0 = tpu.memref_slice %arg6[%c0_i32] : memref<3x!tpu.dma_semaphore, #tpu.memory_space<semaphore_mem>> -> memref<1x!tpu.dma_semaphore, #tpu.memory_space<semaphore_mem>>
    %1 = tpu.memref_squeeze %0 : memref<1x!tpu.dma_semaphore, #tpu.memory_space<semaphore_mem>> -> memref<!tpu.dma_semaphore, #tpu.memory_space<semaphore_mem>>
    tpu.enqueue_dma source(%arg0 : memref<2x8x32xf32, #tpu.memory_space<any>>) target(%arg3 : memref<2x8x32xf32, #tpu.memory_space<any>>) target_semaphore(%1 : memref<!tpu.dma_semaphore, #tpu.memory_space<semaphore_mem>>)
    %c1_i32 = arith.constant 1 : i32
    %2 = tpu.memref_slice %arg6[%c1_i32] : memref<3x!tpu.dma_semaphore, #tpu.memory_space<semaphore_mem>> -> memref<1x!tpu.dma_semaphore, #tpu.memory_space<semaphore_mem>>
    %3 = tpu.memref_squeeze %2 : memref<1x!tpu.dma_semaphore, #tpu.memory_space<semaphore_mem>> -> memref<!tpu.dma_semaphore, #tpu.memory_space<semaphore_mem>>
    tpu.enqueue_dma source(%arg1 : memref<2x8x32xf32, #tpu.memory_space<any>>) target(%arg4 : memref<2x8x32xf32, #tpu.memory_space<any>>) target_semaphore(%3 : memref<!tpu.dma_semaphore, #tpu.memory_space<semaphore_mem>>)
    %c2_i32 = arith.constant 2 : i32
    %4 = tpu.memref_slice %arg6[%c2_i32] : memref<3x!tpu.dma_semaphore, #tpu.memory_space<semaphore_mem>> -> memref<1x!tpu.dma_semaphore, #tpu.memory_space<semaphore_mem>>
    %5 = tpu.memref_squeeze %4 : memref<1x!tpu.dma_semaphore, #tpu.memory_space<semaphore_mem>> -> memref<!tpu.dma_semaphore, #tpu.memory_space<semaphore_mem>>
    tpu.enqueue_dma source(%arg2 : memref<2x8xi32, #tpu.memory_space<any>>) target(%arg5 : memref<2x8xi32, #tpu.memory_space<any>>) target_semaphore(%5 : memref<!tpu.dma_semaphore, #tpu.memory_space<semaphore_mem>>)
    %c0_i32_0 = arith.constant 0 : i32
    %6 = tpu.memref_slice %arg6[%c0_i32_0] : memref<3x!tpu.dma_semaphore, #tpu.memory_space<semaphore_mem>> -> memref<1x!tpu.dma_semaphore, #tpu.memory_space<semaphore_mem>>
    %7 = tpu.memref_squeeze %6 : memref<1x!tpu.dma_semaphore, #tpu.memory_space<semaphore_mem>> -> memref<!tpu.dma_semaphore, #tpu.memory_space<semaphore_mem>>
    tpu.wait_dma2 semaphore(%7 : memref<!tpu.dma_semaphore, #tpu.memory_space<semaphore_mem>>) src(%arg0 : memref<2x8x32xf32, #tpu.memory_space<any>>) dst(%arg3 : memref<2x8x32xf32, #tpu.memory_space<any>>)
    %c1_i32_1 = arith.constant 1 : i32
    %8 = tpu.memref_slice %arg6[%c1_i32_1] : memref<3x!tpu.dma_semaphore, #tpu.memory_space<semaphore_mem>> -> memref<1x!tpu.dma_semaphore, #tpu.memory_space<semaphore_mem>>
    %9 = tpu.memref_squeeze %8 : memref<1x!tpu.dma_semaphore, #tpu.memory_space<semaphore_mem>> -> memref<!tpu.dma_semaphore, #tpu.memory_space<semaphore_mem>>
    tpu.wait_dma2 semaphore(%9 : memref<!tpu.dma_semaphore, #tpu.memory_space<semaphore_mem>>) src(%arg1 : memref<2x8x32xf32, #tpu.memory_space<any>>) dst(%arg4 : memref<2x8x32xf32, #tpu.memory_space<any>>)
    %c2_i32_2 = arith.constant 2 : i32
    %10 = tpu.memref_slice %arg6[%c2_i32_2] : memref<3x!tpu.dma_semaphore, #tpu.memory_space<semaphore_mem>> -> memref<1x!tpu.dma_semaphore, #tpu.memory_space<semaphore_mem>>
    %11 = tpu.memref_squeeze %10 : memref<1x!tpu.dma_semaphore, #tpu.memory_space<semaphore_mem>> -> memref<!tpu.dma_semaphore, #tpu.memory_space<semaphore_mem>>
    tpu.wait_dma2 semaphore(%11 : memref<!tpu.dma_semaphore, #tpu.memory_space<semaphore_mem>>) src(%arg2 : memref<2x8xi32, #tpu.memory_space<any>>) dst(%arg5 : memref<2x8xi32, #tpu.memory_space<any>>)
    return
  }
}

</mosaic_0001>

<llo_original>
// kernel: tpu_custom_call.1
$region0: #{tpu_custom_call.1}
  #allocation0 [shape = 'u32[]', space=smem, size = 0x4, offset = 0x4, fixed_abs, tag = 'smem constant byte address 0x4 - core index']
  #allocation1 [shape = 'u32[144,128]{1,0:T(1,128)}', space=vmem, size = 0x12000, scoped, tag = 'internal scratch']
  #allocation2 [shape = 's32[3]{0}', space=sflag, size = 0xc, scoped, tag = 'scratch operand']
  #allocation3 [shape = 's32[]', space=sflag, size = 0x4, offset = 0, fixed_abs, tag = 'sflag constant byte address 0x0 - dummy sync flag']
  #allocation4 [shape = 'u32[0]{0}', space=smem, size = 0, offset = 0, fixed_abs, tag = 'smem constant byte address 0x0 - null']
  #allocation5 [shape = 's32[]', space=sflag, size = 0x4, offset = 0, fixed_abs, tag = 'sflag constant byte address 0x0 - dummy sync flag']
  #allocation6 [shape = 'u32[0]{0}', space=smem, size = 0, offset = 0, fixed_abs, tag = 'smem constant byte address 0x0 - null']
  #allocation7 [shape = 's32[]', space=sflag, size = 0x4, offset = 0, fixed_abs, tag = 'sflag constant byte address 0x0 - dummy sync flag']
  #allocation8 [shape = 's32[]', space=sflag, size = 0x4, offset = 0, fixed_abs, tag = 'sflag constant byte address 0x0 - dummy sync flag']
  #allocation9 [shape = 'u32[]', space=smem, size = 0x4, offset = 0x44, fixed_abs, tag = 'smem constant byte address 0x44 - assertion arg 0']
  #allocation10 [shape = 'u32[]', space=smem, size = 0x4, offset = 0x48, fixed_abs, tag = 'smem constant byte address 0x48 - assertion arg 1']
  %s0 = inlined_call_operand.hbm [shape: f32[2,8,32], index: 0, kind: input, shape index: {}]
  %s1 = inlined_call_operand.hbm [shape: f32[2,8,32], index: 1, kind: input, shape index: {}]
  %s2 = inlined_call_operand.vmem [shape: s32[2,8], index: 2, kind: input, shape index: {}]
  %s3 = inlined_call_operand.hbm [shape: f32[2,8,32], index: 3, kind: output, shape index: {0}]
  %s4 = inlined_call_operand.hbm [shape: f32[2,8,32], index: 4, kind: output, shape index: {1}]
  %s5 = inlined_call_operand.hbm [shape: s32[2,8], index: 5, kind: output, shape index: {2}]
  %6 = xla_tuple %s3, %s4, %s5
  %s7 = sld [smem:[#allocation0]]
  $region6: #{tpu_custom_call.1} parent=0
    _
  %s9 = ssub.s32 1, %s7
  %s10 = scalar_select 0, %s9, %s7
  %s12 = sshll.u32 1, 14
  %s13 = sxor.u32 4294967295, %s12
  %s16 = sshll.u32 3, 24
  %s17 = sxor.u32 4294967295, %s16
  %s18 = sand.u32 0, %s17
  %s20 = sor.u32 %s18, 0
  %23 = dma.general %s0, 256, %s3, [#allocation2], [#allocation3], [#allocation4], %s20, 0
  %s24 = scalar_lea.sflag [#allocation2], 1
  %s26 = sshll.u32 1, 14
  %s27 = sxor.u32 4294967295, %s26
  %s30 = sshll.u32 3, 24
  %s31 = sxor.u32 4294967295, %s30
  %s32 = sand.u32 0, %s31
  %s34 = sor.u32 %s32, 0
  %37 = dma.general %s1, 256, %s4, %s24, [#allocation5], [#allocation6], %s34, 0
  %s38 = scalar_lea.sflag [#allocation2], 2
  // Predicated region
  $region2: #{tpu_custom_call.1} parent=0 // pred_check
    _
  $region3: #{tpu_custom_call.1} parent=0 // pred_check_branch
    %40 = sbr.rel target = $region5
  $region4: #{tpu_custom_call.1} parent=0 // pred_region
    %41 = sst [smem:[#allocation9]] [#allocation8]
    %42 = sst [smem:[#allocation10]] [#allocation7]
  $region5: #{tpu_custom_call.1} parent=0 // pred_fallthru
    _
  %44 = shalt.err (0)
  %s46 = sshll.u32 %s2, 4
  %s47 = int_to_ptr.vmem [resolvable:$true] %s46
  %49 = dma.vmem_to_hbm [thread:$0]  %s47, 32, %s5, %s38
  %s50 = smul.u32 2, 8
  %s51 = smul.u32 %s50, 1
  %s52 = sshll.u32 %s51, 4
  %53 = dma.done [#allocation2], %s52
  %s54 = sshll.u32 %s51, 4
  %55 = dma.done %s24, %s54
  %s56 = smul.u32 2, 1
  %s57 = sshll.u32 %s56, 4
  %58 = dma.done %s38, %s57
  %59 = vsyncmov [#allocation2]
  %s60 = vpop.sfrf %59
  %p61 = scmp.eq.s32.totalorder %s60, 0
  %p62 = pneg %p61
  %64 = shalt.err (%p62)
  %s65 = scalar_lea.sflag [#allocation2], 1
  %66 = vsyncmov %s65
  %s67 = vpop.sfrf %66
  %p68 = scmp.eq.s32.totalorder %s67, 0
  %p69 = pneg %p68
  %71 = shalt.err (%p69)
  %s72 = scalar_lea.sflag [#allocation2], 2
  %73 = vsyncmov %s72
  %s74 = vpop.sfrf %73
  %p75 = scmp.eq.s32.totalorder %s74, 0
  %p76 = pneg %p75
  %78 = shalt.err (%p76)

</llo_original>
